<compile_context>
chip_gen: v5e
topology: v5e:2x2
jax: 0.10.0
libtpu: 0.0.40
codegen_flags: <defaults>
</compile_context>

<pallas_src>
import jax
import jax.numpy as jnp
import numpy as np
from jax import lax
from jax.experimental import pallas as pl
from jax.experimental.pallas import tpu as pltpu

KSIZE = 3
STRIDE = 2


def _cdiv(a, b):
    return -(-a // b)


def _round_up(v, m):
    return _cdiv(v, m) * m


# ----------------------------- Pallas kernel --------------------------------
def _deconv_row_kernel(lo_ref, hi_ref, wt_ref, b_ref, o_ref):
    """One coarse output row per grid step, channel-major.

    lo_ref: (1, 1, Cip, Wc+1)  compute dtype -- padded x row m   (ta = 0 taps)
    hi_ref: (1, 1, Cip, Wc+1)  compute dtype -- padded x row m+1 (ta = 1 taps)
    wt_ref: (4*C_out, 4*Cip)   compute dtype -- transposed packed deconv weight
    b_ref:  (4*C_out, 1)       f32           -- bias per packed (phase, C_out)
    o_ref:  (1, 1, 4*C_out, Wc) x.dtype      -- 4 sub-pixel phases of coarse row m
    """
    wcp1 = lo_ref.shape[-1]
    wc = wcp1 - 1
    lo = lo_ref[0, 0]                      # (Cip, Wc+1)
    hi = hi_ref[0, 0]                      # (Cip, Wc+1)
    # Tap slab (4*Cip, Wc) built in VMEM: block t = 2*ta + tb holds
    # xpad[c, m+ta, l+tb].  Static lane slices + sublane concat only.
    taps = jnp.concatenate(
        [lo[:, :wc], lo[:, 1:], hi[:, :wc], hi[:, 1:]], axis=0)
    acc = jnp.dot(wt_ref[...], taps, preferred_element_type=jnp.float32)
    o_ref[0, 0] = (acc + b_ref[...]).astype(o_ref.dtype)


# ------------------------------ weight packing -------------------------------
def pack_transition_up_params(weight, bias, compute_dtype=jnp.bfloat16):
    """(C_in, C_out, 3, 3) ConvTranspose2d weight -> channel-major packed form.

    Returns:
      wt:    (4*C_out, 4*Cip) compute_dtype, Cip = round_up(C_in, 16).
             Column block t = 2*ta + tb  <-> tap xpad[m+ta, l+tb] (= x[m-1+ta, ...]).
             Row    index q = (2*dy + dx)*C_out + co <-> fine pixel (2m+dy, 2l+dx).
             A tap on row m-1+ta reaches phase dy via ky = dy (ta=1) or dy+2
             (ta=0); ky/kx > 2 => zero block.  9 of 16 blocks are non-zero,
             matching the 9 transposed-conv taps.
      b_col: (4*C_out, 1) f32 bias, tiled over the 4 phases.
    """
    c_in, c_out = weight.shape[0], weight.shape[1]
    cip = _round_up(c_in, 16)              # sublane/tile alignment for bf16
    wpad = jnp.pad(weight, ((0, cip - c_in), (0, 0), (0, 0), (0, 0)))
    zero = jnp.zeros((cip, c_out), weight.dtype)
    row_blocks = []
    for ta in (0, 1):
        for tb in (0, 1):
            cols = []
            for dy in (0, 1):
                for dx in (0, 1):
                    ky = dy if ta == 1 else dy + 2
                    kx = dx if tb == 1 else dx + 2
                    cols.append(wpad[:, :, ky, kx]
                                if (ky < KSIZE and kx < KSIZE) else zero)
            row_blocks.append(jnp.concatenate(cols, axis=1))   # (Cip, 4*C_out)
    packed = jnp.concatenate(row_blocks, axis=0)               # (4*Cip, 4*C_out)
    wt = jnp.transpose(packed).astype(compute_dtype)           # (4*C_out, 4*Cip)
    b_col = jnp.tile(bias, (4,)).reshape(4 * c_out, 1).astype(jnp.float32)
    return wt, b_col


# ------------------------------ forward pass ---------------------------------
def _transition_up_impl(x, skip, wt_packed, bias_packed):
    """x:(N,C_in,H,W)  skip:(N,C_skip,Hs,Ws)  packed params from
    pack_transition_up_params.  Returns (N, C_out + C_skip, Hs, Ws)."""
    n, c_in, h, w = x.shape
    c_out = wt_packed.shape[0] // 4
    cip = wt_packed.shape[1] // 4
    assert c_in <= cip
    hs, ws = skip.shape[2], skip.shape[3]
    h_out, w_out = STRIDE * h + 1, STRIDE * w + 1           # (H-1)*2 + 3

    if hs > h_out or ws > w_out:
        raise ValueError(
            f"skip spatial ({hs},{ws}) exceeds deconv output ({h_out},{w_out})")

    # center-crop window, restricted to the coarse (stride-2) pixels it touches
    y0 = (h_out - hs) // 2
    x0 = (w_out - ws) // 2
    m0, m1 = y0 // 2, (y0 + hs - 1) // 2
    l0, l1 = x0 // 2, (x0 + ws - 1) // 2
    hc, wc = m1 - m0 + 1, l1 - l0 + 1
    ry, rx = y0 - 2 * m0, x0 - 2 * l0                       # each in {0, 1}

    # ---- single fused pre-pass over x: cast -> (N,H,C,W) -> halo pad -> slice
    cdt = wt_packed.dtype
    xt = jnp.transpose(x.astype(cdt), (0, 2, 1, 3))          # (N, H, C_in, W)
    xp = jnp.pad(xt, ((0, 0), (1, 1), (0, cip - c_in), (1, 1)))
    xp = xp[:, m0:m0 + hc + 1, :, l0:l0 + wc + 1]            # (N, Hc+1, Cip, Wc+1)

    itm = jnp.dtype(cdt).itemsize
    oitm = jnp.dtype(x.dtype).itemsize
    blk = (2 * cip * (wc + 1) * itm          # lo + hi row blocks
           + 16 * c_out * cip * itm          # packed weight
           + 4 * c_out * 4                   # bias
           + 4 * c_out * wc * oitm)          # output block
    vmem_limit = int(min(64 * 2**20, max(32 * 2**20, 3 * blk)))

    out_ph = pl.pallas_call(
        _deconv_row_kernel,
        out_shape=jax.ShapeDtypeStruct((n, hc, 4 * c_out, wc), x.dtype),
        grid_spec=pltpu.PrefetchScalarGridSpec(
            num_scalar_prefetch=0,
            grid=(n, hc),
            in_specs=[
                # same padded array passed twice: row m (ta=0) and row m+1 (ta=1)
                pl.BlockSpec((1, 1, cip, wc + 1), lambda b, m: (b, m, 0, 0)),
                pl.BlockSpec((1, 1, cip, wc + 1), lambda b, m: (b, m + 1, 0, 0)),
                pl.BlockSpec((4 * c_out, 4 * cip), lambda b, m: (0, 0)),
                pl.BlockSpec((4 * c_out, 1), lambda b, m: (0, 0)),
            ],
            out_specs=pl.BlockSpec((1, 1, 4 * c_out, wc),
                                   lambda b, m: (b, m, 0, 0)),
        ),
        compiler_params=pltpu.CompilerParams(
            dimension_semantics=("parallel", "parallel"),
            vmem_limit_bytes=vmem_limit),
    )(xp, xp, wt_packed, bias_packed)

    # thin XLA epilogue: one transpose (phase interleave + NCHW) -> crop -> concat
    out = out_ph.reshape(n, hc, 2, 2, c_out, wc)             # [b, m, dy, dx, c, l]
    out = jnp.transpose(out, (0, 4, 1, 2, 5, 3))             # [b, c, m, dy, l, dx]
    out = out.reshape(n, c_out, 2 * hc, 2 * wc)
    out = out[:, :, ry:ry + hs, rx:rx + ws]
    return jnp.concatenate([out, skip], axis=1)


transition_up = jax.jit(_transition_up_impl)


# ------------------------------ reference ------------------------------------
def _reference(x, skip, weight, bias):
    """Pure-JAX f32 reference of the PyTorch forward."""
    c_out = weight.shape[1]
    w_conv = jnp.transpose(weight[:, :, ::-1, ::-1], (1, 0, 2, 3))  # OIHW
    out = lax.conv_general_dilated(
        x, w_conv, window_strides=(1, 1),
        padding=((KSIZE - 1, KSIZE - 1), (KSIZE - 1, KSIZE - 1)),
        lhs_dilation=(STRIDE, STRIDE),
        dimension_numbers=("NCHW", "OIHW", "NCHW"),
        precision=lax.Precision.HIGHEST)
    out = out + bias.reshape(1, c_out, 1, 1)
    hs, ws = skip.shape[2], skip.shape[3]
    h_out, w_out = out.shape[2], out.shape[3]
    y0 = (h_out - hs) // 2
    x0 = (w_out - ws) // 2
    out = out[:, :, y0:y0 + hs, x0:x0 + ws]
    return jnp.concatenate([out, skip], axis=1)


def _check(key, n, c_in, c_out, c_skip, h, w, hs, ws):
    k1, k2, k3, k4 = jax.random.split(key, 4)
    x = jax.random.normal(k1, (n, c_in, h, w), jnp.float32)
    skip = jax.random.normal(k2, (n, c_skip, hs, ws), jnp.float32)
    bound = 1.0 / np.sqrt(c_in * KSIZE * KSIZE)
    weight = jax.random.uniform(k3, (c_in, c_out, KSIZE, KSIZE),
                                jnp.float32, -bound, bound)
    bias = jax.random.uniform(k4, (c_out,), jnp.float32, -bound, bound)

    wt_packed, b_packed = pack_transition_up_params(weight, bias)
    out = jax.block_until_ready(transition_up(x, skip, wt_packed, b_packed))
    ref = jax.block_until_ready(_reference(x, skip, weight, bias))

    assert out.shape == (n, c_out + c_skip, hs, ws), out.shape
    # bf16 taps/weights with fp32 MXU accumulation vs. an f32 reference.
    np.testing.assert_allclose(np.asarray(out), np.asarray(ref),
                               rtol=3e-2, atol=3e-2)


if __name__ == "__main__":
    key = jax.random.PRNGKey(0)
    k_a, k_b = jax.random.split(key)

    # standard Tiramisu-style usage: skip = 2*H, even crop offset
    _check(k_a, n=2, c_in=4, c_out=4, c_skip=6, h=8, w=8, hs=16, ws=16)
    # odd skip sizes: exercises the odd crop offsets / phase interleave path
    _check(k_b, n=2, c_in=4, c_out=4, c_skip=3, h=8, w=8, hs=15, ws=13)

    print("KERNEL_OK")
</pallas_src>

<mosaic_0001>
module attributes {stable_mosaic.version = 11 : i64} {
  func.func @_deconv_row_kernel(%arg0: i32, %arg1: i32, %arg2: memref<1x1x16x9xbf16, #tpu.memory_space<vmem>>, %arg3: memref<1x1x16x9xbf16, #tpu.memory_space<vmem>>, %arg4: memref<16x64xbf16, #tpu.memory_space<vmem>>, %arg5: memref<16x1xf32, #tpu.memory_space<vmem>>, %arg6: memref<1x1x16x8xf32, #tpu.memory_space<vmem>>) attributes {dimension_semantics = [#tpu.dimension_semantics<parallel>, #tpu.dimension_semantics<parallel>], iteration_bounds = array<i64: 2, 8>, scalar_prefetch = 0 : i64, scratch_operands = 0 : i64, tpu.core_type = #tpu.core_type<tc>, window_params = [{transform_indices = @transform_0, window_bounds = array<i64: 1, 1, 16, 9>}, {transform_indices = @transform_1, window_bounds = array<i64: 1, 1, 16, 9>}, {pipeline_mode = #tpu.pipeline_mode<synchronous>, transform_indices = @transform_2, window_bounds = array<i64: 16, 64>}, {pipeline_mode = #tpu.pipeline_mode<synchronous>, transform_indices = @transform_3, window_bounds = array<i64: 16, 1>}, {transform_indices = @transform_4, window_bounds = array<i64: 1, 1, 16, 8>}]} {
    %c0 = arith.constant 0 : index
    %c0_0 = arith.constant 0 : index
    %c0_1 = arith.constant 0 : index
    %c0_2 = arith.constant 0 : index
    %0 = vector.load %arg2[%c0, %c0_0, %c0_1, %c0_2] : memref<1x1x16x9xbf16, #tpu.memory_space<vmem>>, vector<1x1x16x9xbf16>
    %1 = vector.shape_cast %0 : vector<1x1x16x9xbf16> to vector<16x9xbf16>
    %c0_3 = arith.constant 0 : index
    %c0_4 = arith.constant 0 : index
    %c0_5 = arith.constant 0 : index
    %c0_6 = arith.constant 0 : index
    %2 = vector.load %arg3[%c0_3, %c0_4, %c0_5, %c0_6] : memref<1x1x16x9xbf16, #tpu.memory_space<vmem>>, vector<1x1x16x9xbf16>
    %3 = vector.shape_cast %2 : vector<1x1x16x9xbf16> to vector<16x9xbf16>
    %4 = vector.extract_strided_slice %1 {offsets = [0, 0], sizes = [16, 8], strides = [1, 1]} : vector<16x9xbf16> to vector<16x8xbf16>
    %5 = vector.extract_strided_slice %1 {offsets = [0, 1], sizes = [16, 8], strides = [1, 1]} : vector<16x9xbf16> to vector<16x8xbf16>
    %6 = vector.extract_strided_slice %3 {offsets = [0, 0], sizes = [16, 8], strides = [1, 1]} : vector<16x9xbf16> to vector<16x8xbf16>
    %7 = vector.extract_strided_slice %3 {offsets = [0, 1], sizes = [16, 8], strides = [1, 1]} : vector<16x9xbf16> to vector<16x8xbf16>
    %8 = tpu.concatenate %4, %5, %6, %7 in 0 : vector<16x8xbf16>, vector<16x8xbf16>, vector<16x8xbf16>, vector<16x8xbf16> -> vector<64x8xbf16>
    %c0_7 = arith.constant 0 : index
    %c0_8 = arith.constant 0 : index
    %9 = vector.load %arg4[%c0_7, %c0_8] : memref<16x64xbf16, #tpu.memory_space<vmem>>, vector<16x64xbf16>
    %cst = arith.constant dense<0.000000e+00> : vector<16x8xf32>
    %10 = tpu.matmul %9, %8, %cst {dimension_numbers = #tpu.dot_dimension_numbers<[1], [0], [0], [1], [0, 0, 1, 1], [], []>} : vector<16x64xbf16>, vector<64x8xbf16>, vector<16x8xf32> -> vector<16x8xf32>
    %c0_9 = arith.constant 0 : index
    %c0_10 = arith.constant 0 : index
    %11 = vector.load %arg5[%c0_9, %c0_10] : memref<16x1xf32, #tpu.memory_space<vmem>>, vector<16x1xf32>
    %12 = vector.broadcast %11 : vector<16x1xf32> to vector<16x8xf32>
    %13 = arith.addf %10, %12 : vector<16x8xf32>
    %c0_11 = arith.constant 0 : index
    %c0_12 = arith.constant 0 : index
    %c0_13 = arith.constant 0 : index
    %c0_14 = arith.constant 0 : index
    %14 = vector.load %arg6[%c0_11, %c0_12, %c0_13, %c0_14] : memref<1x1x16x8xf32, #tpu.memory_space<vmem>>, vector<1x1x16x8xf32>
    %15 = vector.shape_cast %14 : vector<1x1x16x8xf32> to vector<16x8xf32>
    %16 = vector.shape_cast %13 : vector<16x8xf32> to vector<1x1x16x8xf32>
    tpu.vector_store %arg6[%c0_11, %c0_12, %c0_13, %c0_14], %16 {strides = array<i32>} : memref<1x1x16x8xf32, #tpu.memory_space<vmem>>, vector<1x1x16x8xf32>,
    return
  }
  func.func @transform_0(%arg0: i32, %arg1: i32) -> (i32, i32, i32, i32) {
    %c0_i32 = arith.constant 0 : i32
    %c0_i32_0 = arith.constant 0 : i32
    %c0_i32_1 = arith.constant 0 : i32
    return %arg0, %arg1, %c0_i32, %c0_i32_0 : i32, i32, i32, i32
  }
  func.func @transform_1(%arg0: i32, %arg1: i32) -> (i32, i32, i32, i32) {
    %c1_i32 = arith.constant 1 : i32
    %0 = arith.addi %arg1, %c1_i32 : i32
    %c0_i32 = arith.constant 0 : i32
    %c0_i32_0 = arith.constant 0 : i32
    %c0_i32_1 = arith.constant 0 : i32
    return %arg0, %0, %c0_i32, %c0_i32_0 : i32, i32, i32, i32
  }
  func.func @transform_2(%arg0: i32, %arg1: i32) -> (i32, i32) {
    %c0_i32 = arith.constant 0 : i32
    %c0_i32_0 = arith.constant 0 : i32
    %c0_i32_1 = arith.constant 0 : i32
    return %c0_i32, %c0_i32_0 : i32, i32
  }
  func.func @transform_3(%arg0: i32, %arg1: i32) -> (i32, i32) {
    %c0_i32 = arith.constant 0 : i32
    %c0_i32_0 = arith.constant 0 : i32
    %c0_i32_1 = arith.constant 0 : i32
    return %c0_i32, %c0_i32_0 : i32, i32
  }
  func.func @transform_4(%arg0: i32, %arg1: i32) -> (i32, i32, i32, i32) {
    %c0_i32 = arith.constant 0 : i32
    %c0_i32_0 = arith.constant 0 : i32
    %c0_i32_1 = arith.constant 0 : i32
    return %arg0, %arg1, %c0_i32, %c0_i32_0 : i32, i32, i32, i32
  }
}

</mosaic_0001>

<llo_original>
// kernel: _transition_up_impl.1
$region0: #{_transition_up_impl.1}
  #allocation0 [shape = 'u32[]', space=smem, size = 0x4, offset = 0x4, fixed_abs, tag = 'smem constant byte address 0x4 - core index']
  #allocation1 [shape = 'u32[72,128]{1,0:T(1,128)}', space=vmem, size = 0x9000, scoped, tag = 'internal scratch']
  %s0 = inlined_call_operand.vmem [shape: bf16[2,9,16,9], index: 0, kind: input, shape index: {}, may-alias: {0,1}]
  %s1 = inlined_call_operand.vmem [shape: bf16[2,9,16,9], index: 1, kind: input, shape index: {}, may-alias: {0,1}]
  %s2 = inlined_call_operand.vmem [shape: bf16[16,64], index: 2, kind: input, shape index: {}]
  %s3 = inlined_call_operand.vmem [shape: f32[16,1], index: 3, kind: input, shape index: {}]
  %s4 = inlined_call_operand.vmem [shape: f32[2,8,16,8], index: 4, kind: output, shape index: {}]
  %s5 = sld [smem:[#allocation0]]
  $region49: #{_transition_up_impl.1} parent=0
    _
  %s7 = ssub.s32 1, %s5
  %s8 = scalar_select 0, %s7, %s5
  loop: start=0, step=1, limit=18
  $region2: #{_transition_up_impl.1} parent=0 // loop_pre_header
    _
  $region3: #{_transition_up_impl.1} parent=0 // loop_header
    %s10 = sphi 0, %s14
    %p11 = scmp.ge.s32.totalorder %s10, 18
    %s17 = sphi 0, %s29
    %s18 = sphi 0, %s25
    %s19 = sphi 0, %s17
    %s20 = sphi 0, %s18
    %s21 = sphi 0, %s19
    %s22 = sphi 0, %s20
    %s34 = sphi 0, %s36
    %s37 = sphi 0, %s34
    %s38 = sphi 0, %s37
    %s54 = sphi 0, %s38
    %s64 = sphi 0, %s66
    %s67 = sphi 0, %s64
    %s68 = sphi 0, %s67
    %s84 = sphi 0, %s68
    %s88 = sphi 0, %s88
    %s90 = sphi 0, %s88
    %s91 = sphi 0, %s90
    %s105 = sphi 0, %s91
    %s109 = sphi 0, %s109
    %s111 = sphi 0, %s109
    %s112 = sphi 0, %s111
    %s126 = sphi 0, %s112
    %s134 = sphi 0, %s136
    %s137 = sphi 0, %s134
    %s138 = sphi 0, %s137
    %s154 = sphi 0, %s138
  $region4: #{_transition_up_impl.1} parent=0 // loop_header_branch
    %13 = sbr.rel (%p11) target = $region8
  $region5: #{_transition_up_impl.1} parent=0 // loop_body
    %s15 = ssub.s32 %s10, 1
    %s16 = ssub.s32 %s10, 2
    %s23 = sadd.s32 1, %s18
    %p24 = scmp.ge.s32.totalorder %s23, 8
    %s25 = scalar_select %p24, 0, %s23
    %s26 = sadd.s32 1, %s17
    %s27 = scalar_select %p24, %s26, %s17
    %p28 = scmp.ge.s32.totalorder %s27, 2
    %s29 = scalar_select %p28, 0, %s27
    %s30 = ssub.s32 %s17, %s29
    %s31 = ssub.s32 %s18, %s25
    %s32 = sor.u32 %s30, %s31
    %p33 = scmp.eq.s32.totalorder %s32, 0
    %s35 = sadd.s32 %s34, 1
    %s36 = scalar_select %p33, %s34, %s35
    %p39 = pneg %p33
    %p40 = scmp.eq.s32.totalorder %s10, 15
    %p41 = por %p39, %p40
    %p42 = scmp.ne.s32.totalorder %s34, %s37
    %p43 = scmp.eq.s32.totalorder %s10, 0
    %p44 = por %p42, %p43
    %p45 = scmp.ne.s32.totalorder %s34, %s37
    %p46 = scmp.eq.s32.totalorder %s15, 15
    %p47 = por %p45, %p46
    %p48 = scmp.ne.s32.totalorder %s37, %s38
    %p49 = scmp.eq.s32.totalorder %s15, 0
    %p50 = por %p48, %p49
    %p51 = scmp.ne.s32.totalorder %s37, %s38
    %p52 = scmp.eq.s32.totalorder %s16, 15
    %p53 = por %p51, %p52
    %p55 = scmp.ne.s32.totalorder %s38, %s54
    %p56 = scmp.eq.s32.totalorder %s16, 0
    %p57 = por %p55, %p56
    %s58 = sadd.s32 %s18, 1
    %s59 = sadd.s32 %s25, 1
    %s60 = ssub.s32 %s17, %s29
    %s61 = ssub.s32 %s58, %s59
    %s62 = sor.u32 %s60, %s61
    %p63 = scmp.eq.s32.totalorder %s62, 0
    %s65 = sadd.s32 %s64, 1
    %s66 = scalar_select %p63, %s64, %s65
    %p69 = pneg %p63
    %p70 = scmp.eq.s32.totalorder %s10, 15
    %p71 = por %p69, %p70
    %p72 = scmp.ne.s32.totalorder %s64, %s67
    %p73 = scmp.eq.s32.totalorder %s10, 0
    %p74 = por %p72, %p73
    %p75 = scmp.ne.s32.totalorder %s64, %s67
    %p76 = scmp.eq.s32.totalorder %s15, 15
    %p77 = por %p75, %p76
    %p78 = scmp.ne.s32.totalorder %s67, %s68
    %p79 = scmp.eq.s32.totalorder %s15, 0
    %p80 = por %p78, %p79
    %p81 = scmp.ne.s32.totalorder %s67, %s68
    %p82 = scmp.eq.s32.totalorder %s16, 15
    %p83 = por %p81, %p82
    %p85 = scmp.ne.s32.totalorder %s68, %s84
    %p86 = scmp.eq.s32.totalorder %s16, 0
    %p87 = por %p85, %p86
    %s89 = sadd.s32 %s88, 1
    %p92 = scmp.eq.s32.totalorder %s10, 15
    %p93 = scmp.ne.s32.totalorder %s88, %s90
    %p94 = scmp.eq.s32.totalorder %s10, 0
    %p95 = por %p93, %p94
    %p96 = scmp.ne.s32.totalorder %s88, %s90
    %p97 = scmp.eq.s32.totalorder %s15, 15
    %p98 = por %p96, %p97
    %p99 = scmp.ne.s32.totalorder %s90, %s91
    %p100 = scmp.eq.s32.totalorder %s15, 0
    %p101 = por %p99, %p100
    %p102 = scmp.ne.s32.totalorder %s90, %s91
    %p103 = scmp.eq.s32.totalorder %s16, 15
    %p104 = por %p102, %p103
    %p106 = scmp.ne.s32.totalorder %s91, %s105
    %p107 = scmp.eq.s32.totalorder %s16, 0
    %p108 = por %p106, %p107
    %s110 = sadd.s32 %s109, 1
    %p113 = scmp.eq.s32.totalorder %s10, 15
    %p114 = scmp.ne.s32.totalorder %s109, %s111
    %p115 = scmp.eq.s32.totalorder %s10, 0
    %p116 = por %p114, %p115
    %p117 = scmp.ne.s32.totalorder %s109, %s111
    %p118 = scmp.eq.s32.totalorder %s15, 15
    %p119 = por %p117, %p118
    %p120 = scmp.ne.s32.totalorder %s111, %s112
    %p121 = scmp.eq.s32.totalorder %s15, 0
    %p122 = por %p120, %p121
    %p123 = scmp.ne.s32.totalorder %s111, %s112
    %p124 = scmp.eq.s32.totalorder %s16, 15
    %p125 = por %p123, %p124
    %p127 = scmp.ne.s32.totalorder %s112, %s126
    %p128 = scmp.eq.s32.totalorder %s16, 0
    %p129 = por %p127, %p128
    %s130 = ssub.s32 %s17, %s29
    %s131 = ssub.s32 %s18, %s25
    %s132 = sor.u32 %s130, %s131
    %p133 = scmp.eq.s32.totalorder %s132, 0
    %s135 = sadd.s32 %s134, 1
    %s136 = scalar_select %p133, %s134, %s135
    %p139 = pneg %p133
    %p140 = scmp.eq.s32.totalorder %s10, 15
    %p141 = por %p139, %p140
    %p142 = scmp.ne.s32.totalorder %s134, %s137
    %p143 = scmp.eq.s32.totalorder %s10, 0
    %p144 = por %p142, %p143
    %p145 = scmp.ne.s32.totalorder %s134, %s137
    %p146 = scmp.eq.s32.totalorder %s15, 15
    %p147 = por %p145, %p146
    %p148 = scmp.ne.s32.totalorder %s137, %s138
    %p149 = scmp.eq.s32.totalorder %s15, 0
    %p150 = por %p148, %p149
    %p151 = scmp.ne.s32.totalorder %s137, %s138
    %p152 = scmp.eq.s32.totalorder %s16, 15
    %p153 = por %p151, %p152
    %p155 = scmp.ne.s32.totalorder %s138, %s154
    %p156 = scmp.eq.s32.totalorder %s16, 0
    %p157 = por %p155, %p156
    %p158 = scmp.le.s32.totalorder 1, %s10
    %p159 = scmp.lt.s32.totalorder %s10, 17
    %p160 = pnand %p158, %p159
    %p161 = pneg %p160
    // Predicated region
    $region9: #{_transition_up_impl.1} parent=5 // pred_check
      _
    $region10: #{_transition_up_impl.1} parent=5 // pred_check_branch
      %163 = sbr.rel (%p160) target = $region12
    $region11: #{_transition_up_impl.1} parent=5 // pred_region
      %s164 = ssub.s32 %s10, 1
      // Predicated region
      $region13: #{_transition_up_impl.1} parent=11 // pred_check
        %p165 = pneg %p101
      $region14: #{_transition_up_impl.1} parent=11 // pred_check_branch
        %167 = sbr.rel (%p165) target = $region16
      $region15: #{_transition_up_impl.1} parent=11 // pred_region
        _
      $region16: #{_transition_up_impl.1} parent=11 // pred_fallthru
        _
      // Predicated region
      $region17: #{_transition_up_impl.1} parent=11 // pred_check
        %p168 = pneg %p122
      $region18: #{_transition_up_impl.1} parent=11 // pred_check_branch
        %170 = sbr.rel (%p168) target = $region20
      $region19: #{_transition_up_impl.1} parent=11 // pred_region
        _
      $region20: #{_transition_up_impl.1} parent=11 // pred_fallthru
        _
    $region12: #{_transition_up_impl.1} parent=5 // pred_fallthru
      _
    %p171 = scmp.lt.s32.totalorder %s10, 16
    // Predicated region
    $region21: #{_transition_up_impl.1} parent=5 // pred_check
      %p172 = pneg %p171
    $region22: #{_transition_up_impl.1} parent=5 // pred_check_branch
      %174 = sbr.rel (%p172) target = $region24
    $region23: #{_transition_up_impl.1} parent=5 // pred_region
      // Predicated region
      $region25: #{_transition_up_impl.1} parent=23 // pred_check
        %p175 = pneg %p44
      $region26: #{_transition_up_impl.1} parent=23 // pred_check_branch
        %177 = sbr.rel (%p175) target = $region28
      $region27: #{_transition_up_impl.1} parent=23 // pred_region
        %p178 = scmp.lt.s32.totalorder %s17, 1
        %s179 = scalar_select %p178, %s17, 1
        %p180 = scmp.lt.s32.totalorder %s18, 8
        %s181 = scalar_select %p180, %s18, 8
        %s182 = smul.addr %s181, 2
        %s183 = smul.addr %s179, 18
        %s184 = sadd.s32 %s182, %s183
        %s185 = smul.addr %s184, 4
        %s186 = scalar_lea.vmem %s0, %s185
      $region28: #{_transition_up_impl.1} parent=23 // pred_fallthru
        _
      // Predicated region
      $region29: #{_transition_up_impl.1} parent=23 // pred_check
        %p187 = pneg %p74
      $region30: #{_transition_up_impl.1} parent=23 // pred_check_branch
        %189 = sbr.rel (%p187) target = $region32
      $region31: #{_transition_up_impl.1} parent=23 // pred_region
        %s190 = sadd.s32 %s18, 1
        %p191 = scmp.lt.s32.totalorder %s17, 1
        %s192 = scalar_select %p191, %s17, 1
        %p193 = scmp.lt.s32.totalorder %s190, 8
        %s194 = scalar_select %p193, %s190, 8
        %s195 = smul.addr %s194, 2
        %s196 = smul.addr %s192, 18
        %s197 = sadd.s32 %s195, %s196
        %s198 = smul.addr %s197, 4
        %s199 = scalar_lea.vmem %s1, %s198
        %s200 = sadd.s32 %s18, 1
      $region32: #{_transition_up_impl.1} parent=23 // pred_fallthru
        _
    $region24: #{_transition_up_impl.1} parent=5 // pred_fallthru
      _
    %p201 = scmp.le.s32.totalorder 1, %s10
    %p202 = scmp.lt.s32.totalorder %s10, 17
    %p203 = pnand %p201, %p202
    %p204 = pneg %p203
    // Predicated region
    $region33: #{_transition_up_impl.1} parent=5 // pred_check
      _
    $region34: #{_transition_up_impl.1} parent=5 // pred_check_branch
      %206 = sbr.rel (%p203) target = $region36
    $region35: #{_transition_up_impl.1} parent=5 // pred_region
      %s207 = ssub.s32 %s10, 1
      %p208 = scmp.lt.s32.totalorder %s19, 1
      %s209 = scalar_select %p208, %s19, 1
      %p210 = scmp.lt.s32.totalorder %s20, 8
      %s211 = scalar_select %p210, %s20, 8
      %s212 = smul.addr %s211, 2
      %s213 = smul.addr %s209, 18
      %s214 = sadd.s32 %s212, %s213
      %s215 = smul.addr %s214, 4
      %s216 = scalar_lea.vmem %s0, %s215
      %p217 = pneg %p50
      %p218 = pneg %p47
      %s219 = sadd.s32 %s20, 1
      %p220 = scmp.lt.s32.totalorder %s19, 1
      %s221 = scalar_select %p220, %s19, 1
      %p222 = scmp.lt.s32.totalorder %s219, 8
      %s223 = scalar_select %p222, %s219, 8
      %s224 = smul.addr %s223, 2
      %s225 = smul.addr %s221, 18
      %s226 = sadd.s32 %s224, %s225
      %s227 = smul.addr %s226, 4
      %s228 = scalar_lea.vmem %s1, %s227
      %p229 = pneg %p80
      %p230 = pneg %p77
      %p231 = pneg %p101
      %p232 = pneg %p98
      %p233 = pneg %p122
      %p234 = pneg %p119
      %p235 = pneg %p150
      %p236 = pneg %p147
      %p237 = scmp.lt.s32.totalorder %s19, 1
      %s238 = scalar_select %p237, %s19, 1
      %p239 = scmp.lt.s32.totalorder %s20, 7
      %s240 = scalar_select %p239, %s20, 7
      %s241 = smul.addr %s240, 2
      %s242 = smul.addr %s238, 16
      %s243 = sadd.s32 %s241, %s242
      %s244 = smul.addr %s243, 8
      %s245 = scalar_lea.vmem %s4, %s244
      %p246 = scmp.lt.s32.totalorder %s19, 1
      %s247 = scalar_select %p246, %s19, 1
      %p248 = scmp.lt.s32.totalorder %s20, 8
      %s249 = scalar_select %p248, %s20, 8
      %s250 = smul.addr %s249, 2
      %s251 = smul.addr %s247, 18
      %s252 = sadd.s32 %s250, %s251
      %s253 = smul.addr %s252, 4
      %s254 = scalar_lea.vmem %s0, %s253
      %s255 = sadd.s32 %s20, 1
      %p256 = scmp.lt.s32.totalorder %s19, 1
      %s257 = scalar_select %p256, %s19, 1
      %p258 = scmp.lt.s32.totalorder %s255, 8
      %s259 = scalar_select %p258, %s255, 8
      %s260 = smul.addr %s259, 2
      %s261 = smul.addr %s257, 18
      %s262 = sadd.s32 %s260, %s261
      %s263 = smul.addr %s262, 4
      %s264 = scalar_lea.vmem %s1, %s263
      %s265 = sadd.s32 %s20, 1
      %p266 = scmp.lt.s32.totalorder %s19, 1
      %s267 = scalar_select %p266, %s19, 1
      %p268 = scmp.lt.s32.totalorder %s20, 7
      %s269 = scalar_select %p268, %s20, 7
      %s270 = smul.addr %s269, 2
      %s271 = smul.addr %s267, 16
      %s272 = sadd.s32 %s270, %s271
      %s273 = smul.addr %s272, 8
      %s274 = scalar_lea.vmem %s4, %s273
      %v276 = vld [vmem:[%s254] sm:$0xf]
      %v277 = vld [vmem:[%s254 + $0x4] sm:$0xf]
      %v278 = vld [vmem:[%s264] sm:$0xf]
      %v279 = vld [vmem:[%s264 + $0x4] sm:$0xf]
      %v282 = vunpack.c.l.b16 %v276
      %v283 = vunpack.c.l.b16 %v277
      %v284 = vpack.c.b16 %v283, %v282
      %286 = vrot.lane.b32.xlu0 %v284, 127
      %v287 = vpop.permute.xlu0 %286
      %v291 = vunpack.c.l.b16 %v278
      %v292 = vunpack.c.l.b16 %v279
      %v293 = vpack.c.b16 %v292, %v291
      %295 = vrot.lane.b32.xlu0 %v293, 127
      %v296 = vpop.permute.xlu0 %295
      %v298 = vld [vmem:[%s2] sm:$0xf]
      %v299 = vld [vmem:[%s2 + $0x4] sm:$0xf]
      %v300 = vld [vmem:[%s3] sm:$0xff]
      %v301 = vld [vmem:[%s3 + $0x8] sm:$0xff]
      %303 = vset.pattern.permute.xlu0 0
      %304 = vperm.xlu0 %303, %v300
      %v305 = vpop.permute.xlu0 %304
      %308 = vset.pattern.permute.xlu0 0
      %309 = vperm.xlu0 %308, %v301
      %v310 = vpop.permute.xlu0 %309
      %v314 = vunpack.c.l.b16 %v298
      %v315 = vunpack.c.l.b16 %v299
      %v316 = vpack.c.b16 %v315, %v314
      %vm317 = vcmask 523264
      %v319 = vsel %vm317, %v316, 0
      %321 = vmatpush.bf16.msra.mxu0 0
      %322 = vmatpush.bf16.msra.mxu0 0
      %323 = vmatpush.bf16.msra.mxu0 0
      %324 = vmatpush.bf16.msra.mxu0 0
      %325 = vmatpush.bf16.msra.mxu0 %v296
      %326 = vmatpush.bf16.msra.mxu0 %v293
      %327 = vmatpush.bf16.msra.mxu0 %v287
      %328 = vmatpush.bf16.msra.mxu0 %v284
      %329 = vmatmul.bf16.gmra.mxu0 %v319
      %v330 = vpop.f32.mrf.mxu0
      %v331 = vadd.f32 %v305, %v330
      %v332 = vpop.f32.mrf.mxu0
      %v333 = vadd.f32 %v310, %v332
      %334 = vdwg.mxu0
      %vm335 = vcmask 64512
      %336 = vst.msk [vmem:[%s274] sm:$0xff] %vm335, %v331
      %337 = vst.msk [vmem:[%s274 + $0x8] sm:$0xff] %vm335, %v333
      %p338 = scmp.lt.s32.totalorder %s19, 1
      %s339 = scalar_select %p338, %s19, 1
      %p340 = scmp.lt.s32.totalorder %s20, 7
      %s341 = scalar_select %p340, %s20, 7
      %s342 = smul.addr %s341, 2
      %s343 = smul.addr %s339, 16
      %s344 = sadd.s32 %s342, %s343
      %s345 = smul.addr %s344, 8
      %s346 = scalar_lea.vmem %s4, %s345
      // Predicated region
      $region37: #{_transition_up_impl.1} parent=35 // pred_check
        %p347 = pneg %p147
      $region38: #{_transition_up_impl.1} parent=35 // pred_check_branch
        %349 = sbr.rel (%p347) target = $region40
      $region39: #{_transition_up_impl.1} parent=35 // pred_region
        _
      $region40: #{_transition_up_impl.1} parent=35 // pred_fallthru
        _
    $region36: #{_transition_up_impl.1} parent=5 // pred_fallthru
      _
    %p350 = scmp.le.s32.totalorder 2, %s10
    // Predicated region
    $region41: #{_transition_up_impl.1} parent=5 // pred_check
      %p351 = pneg %p350
    $region42: #{_transition_up_impl.1} parent=5 // pred_check_branch
      %353 = sbr.rel (%p351) target = $region44
    $region43: #{_transition_up_impl.1} parent=5 // pred_region
      %s354 = ssub.s32 %s10, 2
      // Predicated region
      $region45: #{_transition_up_impl.1} parent=43 // pred_check
        %p355 = pneg %p153
      $region46: #{_transition_up_impl.1} parent=43 // pred_check_branch
        %357 = sbr.rel (%p355) target = $region48
      $region47: #{_transition_up_impl.1} parent=43 // pred_region
        %p358 = scmp.lt.s32.totalorder %s21, 1
        %s359 = scalar_select %p358, %s21, 1
        %p360 = scmp.lt.s32.totalorder %s22, 7
        %s361 = scalar_select %p360, %s22, 7
        %s362 = smul.addr %s361, 2
        %s363 = smul.addr %s359, 16
        %s364 = sadd.s32 %s362, %s363
        %s365 = smul.addr %s364, 8
        %s366 = scalar_lea.vmem %s4, %s365
      $region48: #{_transition_up_impl.1} parent=43 // pred_fallthru
        _
    $region44: #{_transition_up_impl.1} parent=5 // pred_fallthru
      _
  $region6: #{_transition_up_impl.1} parent=0 // loop_footer
    %s14 = sadd.s32 1, %s10
  $region7: #{_transition_up_impl.1} parent=0 // loop_footer_branch
    %9 = sbr.rel target = $region3
  $region8: #{_transition_up_impl.1} parent=0 // loop_exit
    _

</llo_original>
